<compile_context>
chip_gen: v7x
topology: tpu7x:2x2x1
jax: 0.10.0
libtpu: 0.0.40
codegen_flags: <defaults>
</compile_context>

<pallas_src>
import functools
import math

import jax
import jax.numpy as jnp
from jax.experimental import pallas as pl
from jax.experimental.pallas import tpu as pltpu

BN_EPS = 1e-5
_LANE = 128
_SUBLANE = 8


def _round_up(x, m):
    return (x + m - 1) // m * m


def _cdiv(a, b):
    return -(-a // b)


def _pad2(a, shape):
    """Zero-pad a 2-D array up to `shape` (zeros keep all matmuls exact)."""
    return jnp.zeros(shape, a.dtype).at[: a.shape[0], : a.shape[1]].set(a)


# ---------------------------------------------------------------------------
# Pass 1: fc1 (no bias -- it cancels in BatchNorm) + batch-statistics
#         accumulation.  Grid = (cores, tiles_per_core); each core owns its
#         own resident [1,1,Hp] sum / sum-sq accumulator row.
# ---------------------------------------------------------------------------
def _fc1_stats_kernel(x_ref, w1_ref, h_ref, sum_ref, sq_ref):
    @pl.when(pl.program_id(1) == 0)
    def _():
        sum_ref[...] = jnp.zeros_like(sum_ref)
        sq_ref[...] = jnp.zeros_like(sq_ref)

    # bf16 cast happens here, per tile (no wrapper-side cast pass over x).
    h = jnp.dot(x_ref[...].astype(w1_ref.dtype), w1_ref[...],
                preferred_element_type=jnp.float32)
    h_ref[...] = h.astype(h_ref.dtype)            # bf16 intermediate store
    sum_ref[...] += jnp.sum(h, axis=0)[None, None, :]
    sq_ref[...] += jnp.sum(h * h, axis=0)[None, None, :]


# ---------------------------------------------------------------------------
# Pass 2: BN affine (scale/shift precomputed, gamma folded into scale) + ReLU
#         + fused fc2@mapper matmul.  Output written lane-narrow as [TB, P].
# ---------------------------------------------------------------------------
def _bn_relu_fc_kernel(h_ref, scale_ref, shift_ref, w2m_ref, b2m_ref, o_ref,
                       *, p_real):
    a = jnp.maximum(
        h_ref[...].astype(jnp.float32) * scale_ref[...] + shift_ref[...], 0.0)
    o = jnp.dot(a.astype(w2m_ref.dtype), w2m_ref[...],
                preferred_element_type=jnp.float32) + b2m_ref[...]
    o_ref[...] = o[:, :p_real]


def expert_forward(x, params, *, block_batch=1024, matmul_dtype=jnp.bfloat16,
                   num_cores=2):
    """Forward pass of the Expert module. x: [B, input_size] float32."""
    B, In = x.shape
    H = params["w1"].shape[1]
    P = params["w_map"].shape[1]
    Hp = _round_up(H, _LANE)
    Pp = _round_up(P, _LANE)
    f32 = jnp.float32

    # Batch tiling.  TB=1024 amortizes the ~0.35us per-grid-step overhead
    # while the double-buffered f32 x tile (2 * TB * In * 4B ~ 6 MiB) stays
    # far below the 32 MiB scoped-VMEM limit on v5e/v6e/v7x.
    TB = _round_up(min(block_batch, B), _SUBLANE)
    nb = _cdiv(B, TB)                       # real batch tiles
    C = max(1, min(num_cores, nb))          # pass-1 core split (v7x: 2 TCs)
    npc = _cdiv(nb, C)                      # tiles per core
    nb_pad = npc * C
    B_pad = nb_pad * TB

    # Lane-dense, pre-fused weights (tiny; prepared once per trace).
    w1 = _pad2(params["w1"].astype(f32), (In, Hp)).astype(matmul_dtype)
    gamma = _pad2(params["gamma"].astype(f32), (1, Hp))
    beta = _pad2(params["beta"].astype(f32), (1, Hp))
    # fc2 + mapper fusion (mapper has no bias): exact algebra.
    w2m = _pad2(params["w2"] @ params["w_map"], (Hp, Pp)).astype(matmul_dtype)
    b2m = _pad2(params["b2"] @ params["w_map"], (1, Pp)).astype(f32)

    # x stays f32 and, when the batch already divides the grid, is passed
    # through untouched (no pad / cast pre-pass).  Zero-padded rows (no fc1
    # bias) contribute exactly 0 to both stats sums, so no fixup is needed.
    x_in = x.astype(f32)
    if B_pad != B:
        x_in = jnp.zeros((B_pad, In), f32).at[:B].set(x_in)

    # ---- pass 1: fc1 + stats (core-sharded reduction over batch tiles) ----
    h, ssum, ssq = pl.pallas_call(
        _fc1_stats_kernel,
        grid=(C, npc),
        in_specs=[
            pl.BlockSpec((TB, In), lambda c, j: (c * npc + j, 0)),
            pl.BlockSpec((In, Hp), lambda c, j: (0, 0)),
        ],
        out_specs=[
            pl.BlockSpec((TB, Hp), lambda c, j: (c * npc + j, 0)),
            pl.BlockSpec((1, 1, Hp), lambda c, j: (c, 0, 0)),   # per-core acc
            pl.BlockSpec((1, 1, Hp), lambda c, j: (c, 0, 0)),   # per-core acc
        ],
        out_shape=[
            jax.ShapeDtypeStruct((B_pad, Hp), matmul_dtype),    # bf16 h
            jax.ShapeDtypeStruct((C, 1, Hp), f32),
            jax.ShapeDtypeStruct((C, 1, Hp), f32),
        ],
        compiler_params=pltpu.CompilerParams(
            dimension_semantics=("parallel", "arbitrary"),
            vmem_limit_bytes=32 * 1024 * 1024,
        ),
    )(x_in, w1)

    # ---- tiny [1, Hp] epilogue: full-batch BN stats (training semantics) ---
    # Note: single-pass E[h^2]-E[h]^2 can cancel if |mean| >> std; guarded by
    # max(.,0).  With xavier fc1 weights and no bias this is benign here.
    ssum_t = jnp.sum(ssum, axis=0)                     # (1, Hp)
    ssq_t = jnp.sum(ssq, axis=0)                       # (1, Hp)
    mean = ssum_t / B
    var = jnp.maximum(ssq_t / B - mean * mean, 0.0)
    scale = gamma * jax.lax.rsqrt(var + BN_EPS)        # gamma folded in
    shift = beta - mean * scale

    # ---- pass 2: normalize + ReLU + fused fc2@mapper, narrow [B, P] out ----
    out = pl.pallas_call(
        functools.partial(_bn_relu_fc_kernel, p_real=P),
        grid=(nb_pad,),
        in_specs=[
            pl.BlockSpec((TB, Hp), lambda i: (i, 0)),
            pl.BlockSpec((1, Hp), lambda i: (0, 0)),
            pl.BlockSpec((1, Hp), lambda i: (0, 0)),
            pl.BlockSpec((Hp, Pp), lambda i: (0, 0)),
            pl.BlockSpec((1, Pp), lambda i: (0, 0)),
        ],
        out_specs=pl.BlockSpec((TB, P), lambda i: (i, 0)),
        out_shape=jax.ShapeDtypeStruct((B_pad, P), f32),
        compiler_params=pltpu.CompilerParams(
            dimension_semantics=("parallel",),          # megacore on v7x
            vmem_limit_bytes=32 * 1024 * 1024,
        ),
    )(h, scale, shift, w2m, b2m)

    return out if B_pad == B else out[:B]


def init_expert_params(key, input_size, hidden_size, output_size,
                       projected_output_size):
    """Deterministic init mirroring the PyTorch module's shapes.

    fc1/fc2 weights: xavier_uniform (stored pre-transposed [in, out]).
    Biases: PyTorch Linear default uniform(-1/sqrt(fan_in), 1/sqrt(fan_in)).
    mapper: xavier-style uniform (synthetic init). BatchNorm: gamma=1, beta=0.
    """
    k1, k2, k3, k4, k5 = jax.random.split(key, 5)

    def xavier(k, fan_in, fan_out):
        limit = math.sqrt(6.0 / (fan_in + fan_out))
        return jax.random.uniform(k, (fan_in, fan_out), jnp.float32, -limit, limit)

    def bias(k, fan_in, fan_out):
        limit = 1.0 / math.sqrt(fan_in)
        return jax.random.uniform(k, (1, fan_out), jnp.float32, -limit, limit)

    return {
        "w1": xavier(k1, input_size, hidden_size),
        "b1": bias(k2, input_size, hidden_size),
        "gamma": jnp.ones((1, hidden_size), jnp.float32),
        "beta": jnp.zeros((1, hidden_size), jnp.float32),
        "w2": xavier(k3, hidden_size, output_size),
        "b2": bias(k4, hidden_size, output_size),
        "w_map": xavier(k5, output_size, projected_output_size),
    }


def expert_reference_f32(x, p):
    """Pure-f32 reference of the original module forward (with fc1 bias)."""
    h = x @ p["w1"] + p["b1"]
    mean = jnp.mean(h, axis=0, keepdims=True)
    var = jnp.mean((h - mean) ** 2, axis=0, keepdims=True)
    hn = (h - mean) / jnp.sqrt(var + BN_EPS) * p["gamma"] + p["beta"]
    a = jnp.maximum(hn, 0.0)
    return (a @ p["w2"] + p["b2"]) @ p["w_map"]


def expert_reference_mirror(x, p, matmul_dtype=jnp.bfloat16):
    """Pure-JAX reference applying the same fusion / dtype choices as the kernel
    (no fc1 bias -- it cancels in BN; h rounded to bf16 before the affine)."""
    h = jnp.dot(x.astype(matmul_dtype), p["w1"].astype(matmul_dtype),
                preferred_element_type=jnp.float32)
    mean = jnp.mean(h, axis=0, keepdims=True)
    var = jnp.maximum(jnp.mean(h * h, axis=0, keepdims=True) - mean * mean, 0.0)
    scale = p["gamma"] / jnp.sqrt(var + BN_EPS)
    shift = p["beta"] - mean * scale
    h_bf16 = h.astype(matmul_dtype).astype(jnp.float32)
    a = jnp.maximum(h_bf16 * scale + shift, 0.0)
    w2m = (p["w2"] @ p["w_map"]).astype(matmul_dtype)
    b2m = p["b2"] @ p["w_map"]
    return jnp.dot(a.astype(matmul_dtype), w2m,
                   preferred_element_type=jnp.float32) + b2m


if __name__ == "__main__":
    # Small shapes consistent with the module (input_size=768, hidden=20,
    # output=2, projected=2).  Two batch configs:
    #   * B=64, tile 16: 4 tiles, 2-per-core split, NO batch padding
    #     (fast path: x passed straight through).
    #   * B=40, tile 16: ragged batch -> zero-pad path + uneven core split.
    INPUT_SIZE = 768
    HIDDEN_SIZE = 20
    OUTPUT_SIZE = 2
    PROJECTED_OUTPUT_SIZE = 2

    key = jax.random.PRNGKey(0)
    k_x, k_p = jax.random.split(key)
    params = init_expert_params(k_p, INPUT_SIZE, HIDDEN_SIZE,
                                OUTPUT_SIZE, PROJECTED_OUTPUT_SIZE)

    for batch in (64, 40):
        x = jax.random.normal(jax.random.fold_in(k_x, batch),
                              (batch, INPUT_SIZE), jnp.float32)

        fwd = jax.jit(functools.partial(expert_forward, block_batch=16))
        out = jax.block_until_ready(fwd(x, params))
        assert out.shape == (batch, PROJECTED_OUTPUT_SIZE), out.shape

        # Tight check vs a reference mirroring the kernel's fusion/bf16 casts.
        ref_m = expert_reference_mirror(x, params)
        err_m = float(jnp.max(jnp.abs(out - ref_m)))
        assert jnp.allclose(out, ref_m, atol=1e-2, rtol=1e-2), \
            f"B={batch} mirror mismatch {err_m}"

        # Loose semantic check vs the full-f32 original-module reference
        # (difference is bf16 operand rounding only; b1 cancels in BN).
        ref_f = expert_reference_f32(x, params)
        err_f = float(jnp.max(jnp.abs(out - ref_f)))
        assert jnp.allclose(out, ref_f, atol=1e-1, rtol=1e-1), \
            f"B={batch} f32 mismatch {err_f}"

    print("KERNEL_OK")
</pallas_src>

<mosaic_0001>
module attributes {stable_mosaic.version = 11 : i64} {
  func.func @_fc1_stats_kernel(%arg0: i32, %arg1: i32, %arg2: memref<16x768xf32, #tpu.memory_space<vmem>>, %arg3: memref<768x128xbf16, #tpu.memory_space<vmem>>, %arg4: memref<16x128xbf16, #tpu.memory_space<vmem>>, %arg5: memref<1x1x128xf32, #tpu.memory_space<vmem>>, %arg6: memref<1x1x128xf32, #tpu.memory_space<vmem>>) attributes {dimension_semantics = [#tpu.dimension_semantics<parallel>, #tpu.dimension_semantics<arbitrary>], iteration_bounds = array<i64: 2, 2>, scalar_prefetch = 0 : i64, scratch_operands = 0 : i64, tpu.core_type = #tpu.core_type<tc>, window_params = [{transform_indices = @transform_0, window_bounds = array<i64: 16, 768>}, {pipeline_mode = #tpu.pipeline_mode<synchronous>, transform_indices = @transform_1, window_bounds = array<i64: 768, 128>}, {transform_indices = @transform_2, window_bounds = array<i64: 16, 128>}, {transform_indices = @transform_3, window_bounds = array<i64: 1, 1, 128>}, {transform_indices = @transform_4, window_bounds = array<i64: 1, 1, 128>}]} {
    %c0_i32 = arith.constant 0 : i32
    %0 = arith.cmpi eq, %arg1, %c0_i32 : i32
    %1 = arith.extui %0 : i1 to i32
    %c0_i32_0 = arith.constant 0 : i32
    %2 = arith.cmpi ne, %1, %c0_i32_0 : i32
    scf.if %2 {
      %cst_20 = arith.constant 0.000000e+00 : f32
      %20 = vector.broadcast %cst_20 : f32 to vector<1x1x128xf32>
      %c0_21 = arith.constant 0 : index
      %c0_22 = arith.constant 0 : index
      %c0_23 = arith.constant 0 : index
      %21 = vector.load %arg5[%c0_21, %c0_22, %c0_23] : memref<1x1x128xf32, #tpu.memory_space<vmem>>, vector<1x1x128xf32>
      tpu.vector_store %arg5[%c0_21, %c0_22, %c0_23], %20 {strides = array<i32>} : memref<1x1x128xf32, #tpu.memory_space<vmem>>, vector<1x1x128xf32>,
      %cst_24 = arith.constant 0.000000e+00 : f32
      %22 = vector.broadcast %cst_24 : f32 to vector<1x1x128xf32>
      %c0_25 = arith.constant 0 : index
      %c0_26 = arith.constant 0 : index
      %c0_27 = arith.constant 0 : index
      %23 = vector.load %arg6[%c0_25, %c0_26, %c0_27] : memref<1x1x128xf32, #tpu.memory_space<vmem>>, vector<1x1x128xf32>
      tpu.vector_store %arg6[%c0_25, %c0_26, %c0_27], %22 {strides = array<i32>} : memref<1x1x128xf32, #tpu.memory_space<vmem>>, vector<1x1x128xf32>,
    } else {
    }
    %c0 = arith.constant 0 : index
    %c0_1 = arith.constant 0 : index
    %3 = vector.load %arg2[%c0, %c0_1] : memref<16x768xf32, #tpu.memory_space<vmem>>, vector<16x768xf32>
    %4 = arith.truncf %3 : vector<16x768xf32> to vector<16x768xbf16>
    %c0_2 = arith.constant 0 : index
    %c0_3 = arith.constant 0 : index
    %5 = vector.load %arg3[%c0_2, %c0_3] : memref<768x128xbf16, #tpu.memory_space<vmem>>, vector<768x128xbf16>
    %cst = arith.constant dense<0.000000e+00> : vector<16x128xf32>
    %6 = tpu.matmul %4, %5, %cst {dimension_numbers = #tpu.dot_dimension_numbers<[1], [0], [0], [1], [0, 0, 1, 1], [], []>} : vector<16x768xbf16>, vector<768x128xbf16>, vector<16x128xf32> -> vector<16x128xf32>
    %7 = arith.truncf %6 : vector<16x128xf32> to vector<16x128xbf16>
    %c0_4 = arith.constant 0 : index
    %c0_5 = arith.constant 0 : index
    %8 = vector.load %arg4[%c0_4, %c0_5] : memref<16x128xbf16, #tpu.memory_space<vmem>>, vector<16x128xbf16>
    tpu.vector_store %arg4[%c0_4, %c0_5], %7 {strides = array<i32>} : memref<16x128xbf16, #tpu.memory_space<vmem>>, vector<16x128xbf16>,
    %c0_6 = arith.constant 0 : index
    %c0_7 = arith.constant 0 : index
    %c0_8 = arith.constant 0 : index
    %9 = vector.load %arg5[%c0_6, %c0_7, %c0_8] : memref<1x1x128xf32, #tpu.memory_space<vmem>>, vector<1x1x128xf32>
    %cst_9 = arith.constant dense<0.000000e+00> : vector<128xf32>
    %10 = vector.multi_reduction <add>, %6, %cst_9 [0] : vector<16x128xf32> to vector<128xf32>
    %11 = vector.shape_cast %10 : vector<128xf32> to vector<1x1x128xf32>
    %12 = arith.addf %9, %11 : vector<1x1x128xf32>
    %c0_10 = arith.constant 0 : index
    %c0_11 = arith.constant 0 : index
    %c0_12 = arith.constant 0 : index
    %13 = vector.load %arg5[%c0_10, %c0_11, %c0_12] : memref<1x1x128xf32, #tpu.memory_space<vmem>>, vector<1x1x128xf32>
    tpu.vector_store %arg5[%c0_10, %c0_11, %c0_12], %12 {strides = array<i32>} : memref<1x1x128xf32, #tpu.memory_space<vmem>>, vector<1x1x128xf32>,
    %c0_13 = arith.constant 0 : index
    %c0_14 = arith.constant 0 : index
    %c0_15 = arith.constant 0 : index
    %14 = vector.load %arg6[%c0_13, %c0_14, %c0_15] : memref<1x1x128xf32, #tpu.memory_space<vmem>>, vector<1x1x128xf32>
    %15 = arith.mulf %6, %6 : vector<16x128xf32>
    %cst_16 = arith.constant dense<0.000000e+00> : vector<128xf32>
    %16 = vector.multi_reduction <add>, %15, %cst_16 [0] : vector<16x128xf32> to vector<128xf32>
    %17 = vector.shape_cast %16 : vector<128xf32> to vector<1x1x128xf32>
    %18 = arith.addf %14, %17 : vector<1x1x128xf32>
    %c0_17 = arith.constant 0 : index
    %c0_18 = arith.constant 0 : index
    %c0_19 = arith.constant 0 : index
    %19 = vector.load %arg6[%c0_17, %c0_18, %c0_19] : memref<1x1x128xf32, #tpu.memory_space<vmem>>, vector<1x1x128xf32>
    tpu.vector_store %arg6[%c0_17, %c0_18, %c0_19], %18 {strides = array<i32>} : memref<1x1x128xf32, #tpu.memory_space<vmem>>, vector<1x1x128xf32>,
    return
  }
  func.func @transform_0(%arg0: i32, %arg1: i32) -> (i32, i32) {
    %c2_i32 = arith.constant 2 : i32
    %0 = arith.muli %arg0, %c2_i32 : i32
    %1 = arith.addi %0, %arg1 : i32
    %c0_i32 = arith.constant 0 : i32
    %c0_i32_0 = arith.constant 0 : i32
    return %1, %c0_i32 : i32, i32
  }
  func.func @transform_1(%arg0: i32, %arg1: i32) -> (i32, i32) {
    %c0_i32 = arith.constant 0 : i32
    %c0_i32_0 = arith.constant 0 : i32
    %c0_i32_1 = arith.constant 0 : i32
    return %c0_i32, %c0_i32_0 : i32, i32
  }
  func.func @transform_2(%arg0: i32, %arg1: i32) -> (i32, i32) {
    %c2_i32 = arith.constant 2 : i32
    %0 = arith.muli %arg0, %c2_i32 : i32
    %1 = arith.addi %0, %arg1 : i32
    %c0_i32 = arith.constant 0 : i32
    %c0_i32_0 = arith.constant 0 : i32
    return %1, %c0_i32 : i32, i32
  }
  func.func @transform_3(%arg0: i32, %arg1: i32) -> (i32, i32, i32) {
    %c0_i32 = arith.constant 0 : i32
    %c0_i32_0 = arith.constant 0 : i32
    %c0_i32_1 = arith.constant 0 : i32
    return %arg0, %c0_i32, %c0_i32_0 : i32, i32, i32
  }
  func.func @transform_4(%arg0: i32, %arg1: i32) -> (i32, i32, i32) {
    %c0_i32 = arith.constant 0 : i32
    %c0_i32_0 = arith.constant 0 : i32
    %c0_i32_1 = arith.constant 0 : i32
    return %arg0, %c0_i32, %c0_i32_0 : i32, i32, i32
  }
}

module attributes {stable_mosaic.version = 11 : i64} {
  func.func @_bn_relu_fc_kernel(%arg0: i32, %arg1: memref<16x128xbf16, #tpu.memory_space<vmem>>, %arg2: memref<1x128xf32, #tpu.memory_space<vmem>>, %arg3: memref<1x128xf32, #tpu.memory_space<vmem>>, %arg4: memref<128x128xbf16, #tpu.memory_space<vmem>>, %arg5: memref<1x128xf32, #tpu.memory_space<vmem>>, %arg6: memref<16x2xf32, #tpu.memory_space<vmem>>) attributes {dimension_semantics = [#tpu.dimension_semantics<parallel>], iteration_bounds = array<i64: 4>, scalar_prefetch = 0 : i64, scratch_operands = 0 : i64, tpu.core_type = #tpu.core_type<tc>, window_params = [{transform_indices = @transform_0, window_bounds = array<i64: 16, 128>}, {pipeline_mode = #tpu.pipeline_mode<synchronous>, transform_indices = @transform_1, window_bounds = array<i64: 1, 128>}, {pipeline_mode = #tpu.pipeline_mode<synchronous>, transform_indices = @transform_2, window_bounds = array<i64: 1, 128>}, {pipeline_mode = #tpu.pipeline_mode<synchronous>, transform_indices = @transform_3, window_bounds = array<i64: 128, 128>}, {pipeline_mode = #tpu.pipeline_mode<synchronous>, transform_indices = @transform_4, window_bounds = array<i64: 1, 128>}, {transform_indices = @transform_5, window_bounds = array<i64: 16, 2>}]} {
    %c0 = arith.constant 0 : index
    %c0_0 = arith.constant 0 : index
    %0 = vector.load %arg1[%c0, %c0_0] : memref<16x128xbf16, #tpu.memory_space<vmem>>, vector<16x128xbf16>
    %1 = arith.extf %0 : vector<16x128xbf16> to vector<16x128xf32>
    %c0_1 = arith.constant 0 : index
    %c0_2 = arith.constant 0 : index
    %2 = vector.load %arg2[%c0_1, %c0_2] : memref<1x128xf32, #tpu.memory_space<vmem>>, vector<1x128xf32>
    %3 = vector.broadcast %2 : vector<1x128xf32> to vector<16x128xf32>
    %4 = arith.mulf %1, %3 : vector<16x128xf32>
    %c0_3 = arith.constant 0 : index
    %c0_4 = arith.constant 0 : index
    %5 = vector.load %arg3[%c0_3, %c0_4] : memref<1x128xf32, #tpu.memory_space<vmem>>, vector<1x128xf32>
    %6 = vector.broadcast %5 : vector<1x128xf32> to vector<16x128xf32>
    %7 = arith.addf %4, %6 : vector<16x128xf32>
    %cst = arith.constant 0.000000e+00 : f32
    %8 = vector.broadcast %cst : f32 to vector<16x128xf32>
    %9 = arith.maximumf %7, %8 : vector<16x128xf32>
    %10 = arith.truncf %9 : vector<16x128xf32> to vector<16x128xbf16>
    %c0_5 = arith.constant 0 : index
    %c0_6 = arith.constant 0 : index
    %11 = vector.load %arg4[%c0_5, %c0_6] : memref<128x128xbf16, #tpu.memory_space<vmem>>, vector<128x128xbf16>
    %cst_7 = arith.constant dense<0.000000e+00> : vector<16x128xf32>
    %12 = tpu.matmul %10, %11, %cst_7 {dimension_numbers = #tpu.dot_dimension_numbers<[1], [0], [0], [1], [0, 0, 1, 1], [], []>} : vector<16x128xbf16>, vector<128x128xbf16>, vector<16x128xf32> -> vector<16x128xf32>
    %c0_8 = arith.constant 0 : index
    %c0_9 = arith.constant 0 : index
    %13 = vector.load %arg5[%c0_8, %c0_9] : memref<1x128xf32, #tpu.memory_space<vmem>>, vector<1x128xf32>
    %14 = vector.broadcast %13 : vector<1x128xf32> to vector<16x128xf32>
    %15 = arith.addf %12, %14 : vector<16x128xf32>
    %16 = vector.extract_strided_slice %15 {offsets = [0, 0], sizes = [16, 2], strides = [1, 1]} : vector<16x128xf32> to vector<16x2xf32>
    %c0_10 = arith.constant 0 : index
    %c0_11 = arith.constant 0 : index
    %17 = vector.load %arg6[%c0_10, %c0_11] : memref<16x2xf32, #tpu.memory_space<vmem>>, vector<16x2xf32>
    tpu.vector_store %arg6[%c0_10, %c0_11], %16 {strides = array<i32>} : memref<16x2xf32, #tpu.memory_space<vmem>>, vector<16x2xf32>,
    return
  }
  func.func @transform_0(%arg0: i32) -> (i32, i32) {
    %c0_i32 = arith.constant 0 : i32
    %c0_i32_0 = arith.constant 0 : i32
    return %arg0, %c0_i32 : i32, i32
  }
  func.func @transform_1(%arg0: i32) -> (i32, i32) {
    %c0_i32 = arith.constant 0 : i32
    %c0_i32_0 = arith.constant 0 : i32
    %c0_i32_1 = arith.constant 0 : i32
    return %c0_i32, %c0_i32_0 : i32, i32
  }
  func.func @transform_2(%arg0: i32) -> (i32, i32) {
    %c0_i32 = arith.constant 0 : i32
    %c0_i32_0 = arith.constant 0 : i32
    %c0_i32_1 = arith.constant 0 : i32
    return %c0_i32, %c0_i32_0 : i32, i32
  }
  func.func @transform_3(%arg0: i32) -> (i32, i32) {
    %c0_i32 = arith.constant 0 : i32
    %c0_i32_0 = arith.constant 0 : i32
    %c0_i32_1 = arith.constant 0 : i32
    return %c0_i32, %c0_i32_0 : i32, i32
  }
  func.func @transform_4(%arg0: i32) -> (i32, i32) {
    %c0_i32 = arith.constant 0 : i32
    %c0_i32_0 = arith.constant 0 : i32
    %c0_i32_1 = arith.constant 0 : i32
    return %c0_i32, %c0_i32_0 : i32, i32
  }
  func.func @transform_5(%arg0: i32) -> (i32, i32) {
    %c0_i32 = arith.constant 0 : i32
    %c0_i32_0 = arith.constant 0 : i32
    return %arg0, %c0_i32 : i32, i32
  }
}

</mosaic_0001>

<llo_original>
// kernel: expert_forward.3
$region0: #{expert_forward.3}
  #allocation0 [shape = 'u32[]', space=smem, size = 0x4, offset = 0x4, fixed_abs, tag = 'smem constant byte address 0x4 - core index']
  #allocation1 [shape = 'u32[144,128]{1,0:T(1,128)}', space=vmem, size = 0x12000, scoped, tag = 'internal scratch']
  %s0 = inlined_call_operand.vmem [shape: bf16[64,128], index: 0, kind: input, shape index: {}]
  %s1 = inlined_call_operand.vmem [shape: f32[1,128], index: 1, kind: input, shape index: {}]
  %s2 = inlined_call_operand.vmem [shape: f32[1,128], index: 2, kind: input, shape index: {}]
  %s3 = inlined_call_operand.vmem [shape: bf16[128,128], index: 3, kind: input, shape index: {}]
  %s4 = inlined_call_operand.vmem [shape: f32[1,128], index: 4, kind: input, shape index: {}]
  %s5 = inlined_call_operand.vmem [shape: f32[64,2], index: 5, kind: output, shape index: {}]
  %s6 = sld [smem:[#allocation0]]
  $region53: #{expert_forward.3} parent=0
    _
  %s8 = ssub.s32 1, %s6
  %s9 = scalar_select 0, %s8, %s6
  loop: start=0, step=1, limit=6
  $region2: #{expert_forward.3} parent=0 // loop_pre_header
    _
  $region3: #{expert_forward.3} parent=0 // loop_header
    %s11 = sphi 0, %s15
    %p12 = scmp.ge.s32.totalorder %s11, 6
    %s21 = sphi 0, %s23
    %s24 = sphi 0, %s21
    %s25 = sphi 0, %s24
    %s41 = sphi 0, %s25
    %s45 = sphi 0, %s45
    %s47 = sphi 0, %s45
    %s48 = sphi 0, %s47
    %s62 = sphi 0, %s48
    %s66 = sphi 0, %s66
    %s68 = sphi 0, %s66
    %s69 = sphi 0, %s68
    %s83 = sphi 0, %s69
    %s87 = sphi 0, %s87
    %s89 = sphi 0, %s87
    %s90 = sphi 0, %s89
    %s104 = sphi 0, %s90
    %s108 = sphi 0, %s108
    %s110 = sphi 0, %s108
    %s111 = sphi 0, %s110
    %s125 = sphi 0, %s111
    %s131 = sphi 0, %s133
    %s134 = sphi 0, %s131
    %s135 = sphi 0, %s134
    %s151 = sphi 0, %s135
  $region4: #{expert_forward.3} parent=0 // loop_header_branch
    %14 = sbr.rel (%p12) target = $region8
  $region5: #{expert_forward.3} parent=0 // loop_body
    %s16 = ssub.s32 %s11, 1
    %s17 = ssub.s32 %s11, 2
    %s18 = sadd.s32 %s11, 1
    %s19 = ssub.s32 %s11, %s18
    %p20 = scmp.eq.s32.totalorder %s19, 0
    %s22 = sadd.s32 %s21, 1
    %s23 = scalar_select %p20, %s21, %s22
    %p26 = pneg %p20
    %p27 = scmp.eq.s32.totalorder %s11, 3
    %p28 = por %p26, %p27
    %p29 = scmp.ne.s32.totalorder %s21, %s24
    %p30 = scmp.eq.s32.totalorder %s11, 0
    %p31 = por %p29, %p30
    %p32 = scmp.ne.s32.totalorder %s21, %s24
    %p33 = scmp.eq.s32.totalorder %s16, 3
    %p34 = por %p32, %p33
    %p35 = scmp.ne.s32.totalorder %s24, %s25
    %p36 = scmp.eq.s32.totalorder %s16, 0
    %p37 = por %p35, %p36
    %p38 = scmp.ne.s32.totalorder %s24, %s25
    %p39 = scmp.eq.s32.totalorder %s17, 3
    %p40 = por %p38, %p39
    %p42 = scmp.ne.s32.totalorder %s25, %s41
    %p43 = scmp.eq.s32.totalorder %s17, 0
    %p44 = por %p42, %p43
    %s46 = sadd.s32 %s45, 1
    %p49 = scmp.eq.s32.totalorder %s11, 3
    %p50 = scmp.ne.s32.totalorder %s45, %s47
    %p51 = scmp.eq.s32.totalorder %s11, 0
    %p52 = por %p50, %p51
    %p53 = scmp.ne.s32.totalorder %s45, %s47
    %p54 = scmp.eq.s32.totalorder %s16, 3
    %p55 = por %p53, %p54
    %p56 = scmp.ne.s32.totalorder %s47, %s48
    %p57 = scmp.eq.s32.totalorder %s16, 0
    %p58 = por %p56, %p57
    %p59 = scmp.ne.s32.totalorder %s47, %s48
    %p60 = scmp.eq.s32.totalorder %s17, 3
    %p61 = por %p59, %p60
    %p63 = scmp.ne.s32.totalorder %s48, %s62
    %p64 = scmp.eq.s32.totalorder %s17, 0
    %p65 = por %p63, %p64
    %s67 = sadd.s32 %s66, 1
    %p70 = scmp.eq.s32.totalorder %s11, 3
    %p71 = scmp.ne.s32.totalorder %s66, %s68
    %p72 = scmp.eq.s32.totalorder %s11, 0
    %p73 = por %p71, %p72
    %p74 = scmp.ne.s32.totalorder %s66, %s68
    %p75 = scmp.eq.s32.totalorder %s16, 3
    %p76 = por %p74, %p75
    %p77 = scmp.ne.s32.totalorder %s68, %s69
    %p78 = scmp.eq.s32.totalorder %s16, 0
    %p79 = por %p77, %p78
    %p80 = scmp.ne.s32.totalorder %s68, %s69
    %p81 = scmp.eq.s32.totalorder %s17, 3
    %p82 = por %p80, %p81
    %p84 = scmp.ne.s32.totalorder %s69, %s83
    %p85 = scmp.eq.s32.totalorder %s17, 0
    %p86 = por %p84, %p85
    %s88 = sadd.s32 %s87, 1
    %p91 = scmp.eq.s32.totalorder %s11, 3
    %p92 = scmp.ne.s32.totalorder %s87, %s89
    %p93 = scmp.eq.s32.totalorder %s11, 0
    %p94 = por %p92, %p93
    %p95 = scmp.ne.s32.totalorder %s87, %s89
    %p96 = scmp.eq.s32.totalorder %s16, 3
    %p97 = por %p95, %p96
    %p98 = scmp.ne.s32.totalorder %s89, %s90
    %p99 = scmp.eq.s32.totalorder %s16, 0
    %p100 = por %p98, %p99
    %p101 = scmp.ne.s32.totalorder %s89, %s90
    %p102 = scmp.eq.s32.totalorder %s17, 3
    %p103 = por %p101, %p102
    %p105 = scmp.ne.s32.totalorder %s90, %s104
    %p106 = scmp.eq.s32.totalorder %s17, 0
    %p107 = por %p105, %p106
    %s109 = sadd.s32 %s108, 1
    %p112 = scmp.eq.s32.totalorder %s11, 3
    %p113 = scmp.ne.s32.totalorder %s108, %s110
    %p114 = scmp.eq.s32.totalorder %s11, 0
    %p115 = por %p113, %p114
    %p116 = scmp.ne.s32.totalorder %s108, %s110
    %p117 = scmp.eq.s32.totalorder %s16, 3
    %p118 = por %p116, %p117
    %p119 = scmp.ne.s32.totalorder %s110, %s111
    %p120 = scmp.eq.s32.totalorder %s16, 0
    %p121 = por %p119, %p120
    %p122 = scmp.ne.s32.totalorder %s110, %s111
    %p123 = scmp.eq.s32.totalorder %s17, 3
    %p124 = por %p122, %p123
    %p126 = scmp.ne.s32.totalorder %s111, %s125
    %p127 = scmp.eq.s32.totalorder %s17, 0
    %p128 = por %p126, %p127
    %s129 = ssub.s32 %s11, %s18
    %p130 = scmp.eq.s32.totalorder %s129, 0
    %s132 = sadd.s32 %s131, 1
    %s133 = scalar_select %p130, %s131, %s132
    %p136 = pneg %p130
    %p137 = scmp.eq.s32.totalorder %s11, 3
    %p138 = por %p136, %p137
    %p139 = scmp.ne.s32.totalorder %s131, %s134
    %p140 = scmp.eq.s32.totalorder %s11, 0
    %p141 = por %p139, %p140
    %p142 = scmp.ne.s32.totalorder %s131, %s134
    %p143 = scmp.eq.s32.totalorder %s16, 3
    %p144 = por %p142, %p143
    %p145 = scmp.ne.s32.totalorder %s134, %s135
    %p146 = scmp.eq.s32.totalorder %s16, 0
    %p147 = por %p145, %p146
    %p148 = scmp.ne.s32.totalorder %s134, %s135
    %p149 = scmp.eq.s32.totalorder %s17, 3
    %p150 = por %p148, %p149
    %p152 = scmp.ne.s32.totalorder %s135, %s151
    %p153 = scmp.eq.s32.totalorder %s17, 0
    %p154 = por %p152, %p153
    %p155 = scmp.le.s32.totalorder 1, %s11
    %p156 = scmp.lt.s32.totalorder %s11, 5
    %p157 = pnand %p155, %p156
    %p158 = pneg %p157
    // Predicated region
    $region9: #{expert_forward.3} parent=5 // pred_check
      _
    $region10: #{expert_forward.3} parent=5 // pred_check_branch
      %160 = sbr.rel (%p157) target = $region12
    $region11: #{expert_forward.3} parent=5 // pred_region
      %s161 = ssub.s32 %s11, 1
      // Predicated region
      $region13: #{expert_forward.3} parent=11 // pred_check
        %p162 = pneg %p58
      $region14: #{expert_forward.3} parent=11 // pred_check_branch
        %164 = sbr.rel (%p162) target = $region16
      $region15: #{expert_forward.3} parent=11 // pred_region
        _
      $region16: #{expert_forward.3} parent=11 // pred_fallthru
        _
      // Predicated region
      $region17: #{expert_forward.3} parent=11 // pred_check
        %p165 = pneg %p79
      $region18: #{expert_forward.3} parent=11 // pred_check_branch
        %167 = sbr.rel (%p165) target = $region20
      $region19: #{expert_forward.3} parent=11 // pred_region
        _
      $region20: #{expert_forward.3} parent=11 // pred_fallthru
        _
      // Predicated region
      $region21: #{expert_forward.3} parent=11 // pred_check
        %p168 = pneg %p100
      $region22: #{expert_forward.3} parent=11 // pred_check_branch
        %170 = sbr.rel (%p168) target = $region24
      $region23: #{expert_forward.3} parent=11 // pred_region
        _
      $region24: #{expert_forward.3} parent=11 // pred_fallthru
        _
      // Predicated region
      $region25: #{expert_forward.3} parent=11 // pred_check
        %p171 = pneg %p121
      $region26: #{expert_forward.3} parent=11 // pred_check_branch
        %173 = sbr.rel (%p171) target = $region28
      $region27: #{expert_forward.3} parent=11 // pred_region
        _
      $region28: #{expert_forward.3} parent=11 // pred_fallthru
        _
    $region12: #{expert_forward.3} parent=5 // pred_fallthru
      _
    %p174 = scmp.lt.s32.totalorder %s11, 4
    // Predicated region
    $region29: #{expert_forward.3} parent=5 // pred_check
      %p175 = pneg %p174
    $region30: #{expert_forward.3} parent=5 // pred_check_branch
      %177 = sbr.rel (%p175) target = $region32
    $region31: #{expert_forward.3} parent=5 // pred_region
      // Predicated region
      $region33: #{expert_forward.3} parent=31 // pred_check
        %p178 = pneg %p31
      $region34: #{expert_forward.3} parent=31 // pred_check_branch
        %180 = sbr.rel (%p178) target = $region36
      $region35: #{expert_forward.3} parent=31 // pred_region
        %s181 = smul.u32 2, %s11
        %p182 = scmp.lt.s32.totalorder %s181, 7
        %s183 = scalar_select %p182, %s181, 7
        %s184 = smul.addr %s183, 4
        %s185 = scalar_lea.vmem %s0, %s184
        %s186 = smul.u32 2, %s11
      $region36: #{expert_forward.3} parent=31 // pred_fallthru
        _
    $region32: #{expert_forward.3} parent=5 // pred_fallthru
      _
    %p187 = scmp.le.s32.totalorder 1, %s11
    %p188 = scmp.lt.s32.totalorder %s11, 5
    %p189 = pnand %p187, %p188
    %p190 = pneg %p189
    // Predicated region
    $region37: #{expert_forward.3} parent=5 // pred_check
      _
    $region38: #{expert_forward.3} parent=5 // pred_check_branch
      %192 = sbr.rel (%p189) target = $region40
    $region39: #{expert_forward.3} parent=5 // pred_region
      %s193 = ssub.s32 %s11, 1
      %s194 = smul.u32 2, %s16
      %p195 = scmp.lt.s32.totalorder %s194, 7
      %s196 = scalar_select %p195, %s194, 7
      %s197 = smul.addr %s196, 4
      %s198 = scalar_lea.vmem %s0, %s197
      %p199 = pneg %p37
      %p200 = pneg %p34
      %p201 = pneg %p58
      %p202 = pneg %p55
      %p203 = pneg %p79
      %p204 = pneg %p76
      %p205 = pneg %p100
      %p206 = pneg %p97
      %p207 = pneg %p121
      %p208 = pneg %p118
      %p209 = pneg %p147
      %p210 = pneg %p144
      %s211 = smul.u32 2, %s16
      %p212 = scmp.lt.s32.totalorder %s211, 7
      %s213 = scalar_select %p212, %s211, 7
      %s214 = smul.addr %s213, 8
      %s215 = scalar_lea.vmem %s5, %s214
      %s216 = smul.u32 2, %s16
      %p217 = scmp.lt.s32.totalorder %s216, 7
      %s218 = scalar_select %p217, %s216, 7
      %s219 = smul.addr %s218, 4
      %s220 = scalar_lea.vmem %s0, %s219
      %s221 = smul.u32 2, %s16
      %s222 = smul.u32 2, %s16
      %p223 = scmp.lt.s32.totalorder %s222, 7
      %s224 = scalar_select %p223, %s222, 7
      %s225 = smul.addr %s224, 8
      %s226 = scalar_lea.vmem %s5, %s225
      %s227 = smul.u32 2, %s16
      %v229 = vld [vmem:[%s220] sm:$0xf]
      %v230 = vld [vmem:[%s220 + $0x4] sm:$0xf]
      %v231 = vunpack.c.l.bf16 %v229
      %v232 = vunpack.c.l.bf16 %v230
      %v233 = vld [vmem:[%s1] sm:$0x1]
      %v235 = vlaneseq
      %v236 = vshrl.u32 %v235, 7
      %v237 = vsub.s32 0, %v236
      %v238 = vrot.slane %v233, %v237
      %v240 = vmul.f32 %v231, %v238
      %v241 = vmul.f32 %v232, %v238
      %v242 = vld [vmem:[%s2] sm:$0x1]
      %v244 = vlaneseq
      %v245 = vshrl.u32 %v244, 7
      %v246 = vsub.s32 0, %v245
      %v247 = vrot.slane %v242, %v246
      %v249 = vadd.f32 %v240, %v247
      %v250 = vadd.f32 %v241, %v247
      %v251 = vmax.f32 %v249, 0.0
      %v252 = vmax.f32 %v250, 0.0
      %v253 = vpack.c.bf16 %v252, %v251
      %v254 = vld [vmem:[%s3] sm:$0xf]
      %v255 = vld [vmem:[%s3 + $0x4] sm:$0xf]
      %v256 = vld [vmem:[%s3 + $0x8] sm:$0xf]
      %v257 = vld [vmem:[%s3 + $0xc] sm:$0xf]
      %v258 = vld [vmem:[%s3 + $0x10] sm:$0xf]
      %v259 = vld [vmem:[%s3 + $0x14] sm:$0xf]
      %v260 = vld [vmem:[%s3 + $0x18] sm:$0xf]
      %v261 = vld [vmem:[%s3 + $0x1c] sm:$0xf]
      %v262 = vld [vmem:[%s3 + $0x20] sm:$0xf]
      %v263 = vld [vmem:[%s3 + $0x24] sm:$0xf]
      %v264 = vld [vmem:[%s3 + $0x28] sm:$0xf]
      %v265 = vld [vmem:[%s3 + $0x2c] sm:$0xf]
      %v266 = vld [vmem:[%s3 + $0x30] sm:$0xf]
      %v267 = vld [vmem:[%s3 + $0x34] sm:$0xf]
      %v268 = vld [vmem:[%s3 + $0x38] sm:$0xf]
      %v269 = vld [vmem:[%s3 + $0x3c] sm:$0xf]
      %v270 = vld [vmem:[%s4] sm:$0x1]
      %v272 = vlaneseq
      %v273 = vshrl.u32 %v272, 7
      %v274 = vsub.s32 0, %v273
      %v275 = vrot.slane %v270, %v274
      %v293 = vunpack.c.l.b16 %v254
      %v294 = vunpack.c.l.b16 %v255
      %v295 = vunpack.c.l.b16 %v256
      %v296 = vunpack.c.l.b16 %v257
      %v297 = vunpack.c.l.b16 %v258
      %v298 = vunpack.c.l.b16 %v259
      %v299 = vunpack.c.l.b16 %v260
      %v300 = vunpack.c.l.b16 %v261
      %v301 = vunpack.c.l.b16 %v262
      %v302 = vunpack.c.l.b16 %v263
      %v303 = vunpack.c.l.b16 %v264
      %v304 = vunpack.c.l.b16 %v265
      %v305 = vunpack.c.l.b16 %v266
      %v306 = vunpack.c.l.b16 %v267
      %v307 = vunpack.c.l.b16 %v268
      %v308 = vunpack.c.l.b16 %v269
      %v309 = vpack.c.b16 %v294, %v293
      %v310 = vpack.c.b16 %v296, %v295
      %v311 = vpack.c.b16 %v298, %v297
      %v312 = vpack.c.b16 %v300, %v299
      %v313 = vpack.c.b16 %v302, %v301
      %v314 = vpack.c.b16 %v304, %v303
      %v315 = vpack.c.b16 %v306, %v305
      %v316 = vpack.c.b16 %v308, %v307
      %325 = vmatprep.subr.bf16.mxu0 0
      %326 = vmatpush1.bf16.msra.mxu0 %v309
      %327 = vmatprep.subr.bf16.mxu0 0
      %328 = vmatpush1.bf16.msra.mxu0 %v310
      %329 = vmatprep.subr.bf16.mxu0 0
      %330 = vmatpush1.bf16.msra.mxu0 %v311
      %331 = vmatprep.subr.bf16.mxu0 0
      %332 = vmatpush1.bf16.msra.mxu0 %v312
      %333 = vmatprep.subr.bf16.mxu0 0
      %334 = vmatpush1.bf16.msra.mxu0 %v313
      %335 = vmatprep.subr.bf16.mxu0 0
      %336 = vmatpush1.bf16.msra.mxu0 %v314
      %337 = vmatprep.subr.bf16.mxu0 0
      %338 = vmatpush1.bf16.msra.mxu0 %v315
      %339 = vmatprep.subr.bf16.mxu0 0
      %340 = vmatpush1.bf16.msra.mxu0 %v316
      %341 = vmatprep.subr.bf16.mxu0 0
      %342 = vmatpush1.bf16.msra.mxu0 0
      %343 = vmatprep.subr.bf16.mxu0 0
      %344 = vmatpush1.bf16.msra.mxu0 0
      %345 = vmatprep.subr.bf16.mxu0 0
      %346 = vmatpush1.bf16.msra.mxu0 0
      %347 = vmatprep.subr.bf16.mxu0 0
      %348 = vmatpush1.bf16.msra.mxu0 0
      %349 = vmatprep.subr.bf16.mxu0 0
      %350 = vmatpush1.bf16.msra.mxu0 0
      %351 = vmatprep.subr.bf16.mxu0 0
      %352 = vmatpush1.bf16.msra.mxu0 0
      %353 = vmatprep.subr.bf16.mxu0 0
      %354 = vmatpush1.bf16.msra.mxu0 0
      %355 = vmatprep.subr.bf16.mxu0 0
      %356 = vmatpush1.bf16.msra.mxu0 0
      %357 = vmatprep.mubr.bf16.mxu0 0
      %358 = vmatmul.mubr.bf16.gmra.mrb[0].mxu0 %v253
      %v359 = vpop.f32.mrb[0].mxu0
      %v360 = vadd.f32 %v275, %v359
      %v361 = vpop.f32.mrb[0].mxu0
      %v362 = vpop.f32.mrb[0].mxu0
      %v363 = vadd.f32 %v275, %v362
      %v364 = vpop.f32.mrb[0].mxu0
      %365 = vdwg.mxu0
      %vm366 = vcmask 15360
      %367 = vst.msk [vmem:[%s226] sm:$0xff] %vm366, %v360
      %368 = vst.msk [vmem:[%s226 + $0x8] sm:$0xff] %vm366, %v363
      %s369 = smul.u32 2, %s16
      %p370 = scmp.lt.s32.totalorder %s369, 7
      %s371 = scalar_select %p370, %s369, 7
      %s372 = smul.addr %s371, 8
      %s373 = scalar_lea.vmem %s5, %s372
      // Predicated region
      $region41: #{expert_forward.3} parent=39 // pred_check
        %p374 = pneg %p144
      $region42: #{expert_forward.3} parent=39 // pred_check_branch
        %376 = sbr.rel (%p374) target = $region44
      $region43: #{expert_forward.3} parent=39 // pred_region
        %s377 = smul.u32 2, %s16
      $region44: #{expert_forward.3} parent=39 // pred_fallthru
        _
    $region40: #{expert_forward.3} parent=5 // pred_fallthru
      _
    %p378 = scmp.le.s32.totalorder 2, %s11
    // Predicated region
    $region45: #{expert_forward.3} parent=5 // pred_check
      %p379 = pneg %p378
    $region46: #{expert_forward.3} parent=5 // pred_check_branch
      %381 = sbr.rel (%p379) target = $region48
    $region47: #{expert_forward.3} parent=5 // pred_region
      %s382 = ssub.s32 %s11, 2
      // Predicated region
      $region49: #{expert_forward.3} parent=47 // pred_check
        %p383 = pneg %p150
      $region50: #{expert_forward.3} parent=47 // pred_check_branch
        %385 = sbr.rel (%p383) target = $region52
      $region51: #{expert_forward.3} parent=47 // pred_region
        %s386 = smul.u32 2, %s17
        %p387 = scmp.lt.s32.totalorder %s386, 7
        %s388 = scalar_select %p387, %s386, 7
        %s389 = smul.addr %s388, 8
        %s390 = scalar_lea.vmem %s5, %s389
      $region52: #{expert_forward.3} parent=47 // pred_fallthru
        _
    $region48: #{expert_forward.3} parent=5 // pred_fallthru
      _
  $region6: #{expert_forward.3} parent=0 // loop_footer
    %s15 = sadd.s32 1, %s11
  $region7: #{expert_forward.3} parent=0 // loop_footer_branch
    %10 = sbr.rel target = $region3
  $region8: #{expert_forward.3} parent=0 // loop_exit
    _

// kernel: expert_forward.2
$region0: #{expert_forward.2}
  #allocation0 [shape = 'u32[]', space=smem, size = 0x4, offset = 0x4, fixed_abs, tag = 'smem constant byte address 0x4 - core index']
  #allocation1 [shape = 'u32[144,128]{1,0:T(1,128)}', space=vmem, size = 0x12000, scoped, tag = 'internal scratch']
  %s0 = inlined_call_operand.vmem [shape: f32[64,768], index: 0, kind: input, shape index: {}]
  %s1 = inlined_call_operand.vmem [shape: bf16[768,128], index: 1, kind: input, shape index: {}]
  %s2 = inlined_call_operand.vmem [shape: bf16[64,128], index: 2, kind: output, shape index: {0}]
  %s3 = inlined_call_operand.vmem [shape: f32[2,1,128], index: 3, kind: output, shape index: {1}]
  %s4 = inlined_call_operand.vmem [shape: f32[2,1,128], index: 4, kind: output, shape index: {2}]
  %5 = xla_tuple %s2, %s3, %s4
  %s6 = sld [smem:[#allocation0]]
  $region61: #{expert_forward.2} parent=0
    _
  %s8 = ssub.s32 1, %s6
  %s9 = scalar_select 0, %s8, %s6
  loop: start=0, step=1, limit=6
  $region2: #{expert_forward.2} parent=0 // loop_pre_header
    _
  $region3: #{expert_forward.2} parent=0 // loop_header
    %s11 = sphi 0, %s15
    %p12 = scmp.ge.s32.totalorder %s11, 6
    %s18 = sphi 0, %s30
    %s19 = sphi 0, %s26
    %s20 = sphi 0, %s18
    %s21 = sphi 0, %s19
    %s22 = sphi 0, %s20
    %s23 = sphi 0, %s21
    %s37 = sphi 0, %s39
    %s40 = sphi 0, %s37
    %s41 = sphi 0, %s40
    %s57 = sphi 0, %s41
    %s61 = sphi 0, %s61
    %s63 = sphi 0, %s61
    %s64 = sphi 0, %s63
    %s78 = sphi 0, %s64
    %s88 = sphi 0, %s90
    %s91 = sphi 0, %s88
    %s92 = sphi 0, %s91
    %s108 = sphi 0, %s92
    %s114 = sphi 0, %s116
    %s117 = sphi 0, %s114
    %s118 = sphi 0, %s117
    %s134 = sphi 0, %s118
    %s140 = sphi 0, %s142
    %s143 = sphi 0, %s140
    %s144 = sphi 0, %s143
    %s160 = sphi 0, %s144
  $region4: #{expert_forward.2} parent=0 // loop_header_branch
    %14 = sbr.rel (%p12) target = $region8
  $region5: #{expert_forward.2} parent=0 // loop_body
    %s16 = ssub.s32 %s11, 1
    %s17 = ssub.s32 %s11, 2
    %s24 = sadd.s32 1, %s19
    %p25 = scmp.ge.s32.totalorder %s24, 2
    %s26 = scalar_select %p25, 0, %s24
    %s27 = sadd.s32 1, %s18
    %s28 = scalar_select %p25, %s27, %s18
    %p29 = scmp.ge.s32.totalorder %s28, 2
    %s30 = scalar_select %p29, 0, %s28
    %s31 = smul.u32 %s18, 2
    %s32 = sadd.s32 %s31, %s19
    %s33 = smul.u32 %s30, 2
    %s34 = sadd.s32 %s33, %s26
    %s35 = ssub.s32 %s32, %s34
    %p36 = scmp.eq.s32.totalorder %s35, 0
    %s38 = sadd.s32 %s37, 1
    %s39 = scalar_select %p36, %s37, %s38
    %p42 = pneg %p36
    %p43 = scmp.eq.s32.totalorder %s11, 3
    %p44 = por %p42, %p43
    %p45 = scmp.ne.s32.totalorder %s37, %s40
    %p46 = scmp.eq.s32.totalorder %s11, 0
    %p47 = por %p45, %p46
    %p48 = scmp.ne.s32.totalorder %s37, %s40
    %p49 = scmp.eq.s32.totalorder %s16, 3
    %p50 = por %p48, %p49
    %p51 = scmp.ne.s32.totalorder %s40, %s41
    %p52 = scmp.eq.s32.totalorder %s16, 0
    %p53 = por %p51, %p52
    %p54 = scmp.ne.s32.totalorder %s40, %s41
    %p55 = scmp.eq.s32.totalorder %s17, 3
    %p56 = por %p54, %p55
    %p58 = scmp.ne.s32.totalorder %s41, %s57
    %p59 = scmp.eq.s32.totalorder %s17, 0
    %p60 = por %p58, %p59
    %s62 = sadd.s32 %s61, 1
    %p65 = scmp.eq.s32.totalorder %s11, 3
    %p66 = scmp.ne.s32.totalorder %s61, %s63
    %p67 = scmp.eq.s32.totalorder %s11, 0
    %p68 = por %p66, %p67
    %p69 = scmp.ne.s32.totalorder %s61, %s63
    %p70 = scmp.eq.s32.totalorder %s16, 3
    %p71 = por %p69, %p70
    %p72 = scmp.ne.s32.totalorder %s63, %s64
    %p73 = scmp.eq.s32.totalorder %s16, 0
    %p74 = por %p72, %p73
    %p75 = scmp.ne.s32.totalorder %s63, %s64
    %p76 = scmp.eq.s32.totalorder %s17, 3
    %p77 = por %p75, %p76
    %p79 = scmp.ne.s32.totalorder %s64, %s78
    %p80 = scmp.eq.s32.totalorder %s17, 0
    %p81 = por %p79, %p80
    %s82 = smul.u32 %s18, 2
    %s83 = sadd.s32 %s82, %s19
    %s84 = smul.u32 %s30, 2
    %s85 = sadd.s32 %s84, %s26
    %s86 = ssub.s32 %s83, %s85
    %p87 = scmp.eq.s32.totalorder %s86, 0
    %s89 = sadd.s32 %s88, 1
    %s90 = scalar_select %p87, %s88, %s89
    %p93 = pneg %p87
    %p94 = scmp.eq.s32.totalorder %s11, 3
    %p95 = por %p93, %p94
    %p96 = scmp.ne.s32.totalorder %s88, %s91
    %p97 = scmp.eq.s32.totalorder %s11, 0
    %p98 = por %p96, %p97
    %p99 = scmp.ne.s32.totalorder %s88, %s91
    %p100 = scmp.eq.s32.totalorder %s16, 3
    %p101 = por %p99, %p100
    %p102 = scmp.ne.s32.totalorder %s91, %s92
    %p103 = scmp.eq.s32.totalorder %s16, 0
    %p104 = por %p102, %p103
    %p105 = scmp.ne.s32.totalorder %s91, %s92
    %p106 = scmp.eq.s32.totalorder %s17, 3
    %p107 = por %p105, %p106
    %p109 = scmp.ne.s32.totalorder %s92, %s108
    %p110 = scmp.eq.s32.totalorder %s17, 0
    %p111 = por %p109, %p110
    %s112 = ssub.s32 %s18, %s30
    %p113 = scmp.eq.s32.totalorder %s112, 0
    %s115 = sadd.s32 %s114, 1
    %s116 = scalar_select %p113, %s114, %s115
    %p119 = pneg %p113
    %p120 = scmp.eq.s32.totalorder %s11, 3
    %p121 = por %p119, %p120
    %p122 = scmp.ne.s32.totalorder %s114, %s117
    %p123 = scmp.eq.s32.totalorder %s11, 0
    %p124 = por %p122, %p123
    %p125 = scmp.ne.s32.totalorder %s114, %s117
    %p126 = scmp.eq.s32.totalorder %s16, 3
    %p127 = por %p125, %p126
    %p128 = scmp.ne.s32.totalorder %s117, %s118
    %p129 = scmp.eq.s32.totalorder %s16, 0
    %p130 = por %p128, %p129
    %p131 = scmp.ne.s32.totalorder %s117, %s118
    %p132 = scmp.eq.s32.totalorder %s17, 3
    %p133 = por %p131, %p132
    %p135 = scmp.ne.s32.totalorder %s118, %s134
    %p136 = scmp.eq.s32.totalorder %s17, 0
    %p137 = por %p135, %p136
    %s138 = ssub.s32 %s18, %s30
    %p139 = scmp.eq.s32.totalorder %s138, 0
    %s141 = sadd.s32 %s140, 1
    %s142 = scalar_select %p139, %s140, %s141
    %p145 = pneg %p139
    %p146 = scmp.eq.s32.totalorder %s11, 3
    %p147 = por %p145, %p146
    %p148 = scmp.ne.s32.totalorder %s140, %s143
    %p149 = scmp.eq.s32.totalorder %s11, 0
    %p150 = por %p148, %p149
    %p151 = scmp.ne.s32.totalorder %s140, %s143
    %p152 = scmp.eq.s32.totalorder %s16, 3
    %p153 = por %p151, %p152
    %p154 = scmp.ne.s32.totalorder %s143, %s144
    %p155 = scmp.eq.s32.totalorder %s16, 0
    %p156 = por %p154, %p155
    %p157 = scmp.ne.s32.totalorder %s143, %s144
    %p158 = scmp.eq.s32.totalorder %s17, 3
    %p159 = por %p157, %p158
    %p161 = scmp.ne.s32.totalorder %s144, %s160
    %p162 = scmp.eq.s32.totalorder %s17, 0
    %p163 = por %p161, %p162
    %p164 = scmp.le.s32.totalorder 1, %s11
    %p165 = scmp.lt.s32.totalorder %s11, 5
    %p166 = pnand %p164, %p165
    %p167 = pneg %p166
    // Predicated region
    $region9: #{expert_forward.2} parent=5 // pred_check
      _
    $region10: #{expert_forward.2} parent=5 // pred_check_branch
      %169 = sbr.rel (%p166) target = $region12
    $region11: #{expert_forward.2} parent=5 // pred_region
      %s170 = ssub.s32 %s11, 1
      // Predicated region
      $region13: #{expert_forward.2} parent=11 // pred_check
        %p171 = pneg %p74
      $region14: #{expert_forward.2} parent=11 // pred_check_branch
        %173 = sbr.rel (%p171) target = $region16
      $region15: #{expert_forward.2} parent=11 // pred_region
        _
      $region16: #{expert_forward.2} parent=11 // pred_fallthru
        _
    $region12: #{expert_forward.2} parent=5 // pred_fallthru
      _
    %p174 = scmp.lt.s32.totalorder %s11, 4
    // Predicated region
    $region17: #{expert_forward.2} parent=5 // pred_check
      %p175 = pneg %p174
    $region18: #{expert_forward.2} parent=5 // pred_check_branch
      %177 = sbr.rel (%p175) target = $region20
    $region19: #{expert_forward.2} parent=5 // pred_region
      // Predicated region
      $region21: #{expert_forward.2} parent=19 // pred_check
        %p178 = pneg %p47
      $region22: #{expert_forward.2} parent=19 // pred_check_branch
        %180 = sbr.rel (%p178) target = $region24
      $region23: #{expert_forward.2} parent=19 // pred_region
        %s181 = smul.u32 %s18, 2
        %s182 = sadd.s32 %s181, %s19
        %s183 = smul.u32 2, %s182
        %p184 = scmp.lt.s32.totalorder %s183, 7
        %s185 = scalar_select %p184, %s183, 7
        %s186 = smul.addr %s185, 6
        %s187 = smul.addr %s186, 8
        %s188 = scalar_lea.vmem %s0, %s187
        %s189 = smul.u32 %s18, 2
        %s190 = sadd.s32 %s189, %s19
        %s191 = smul.u32 2, %s190
      $region24: #{expert_forward.2} parent=19 // pred_fallthru
        _
    $region20: #{expert_forward.2} parent=5 // pred_fallthru
      _
    %p192 = scmp.le.s32.totalorder 1, %s11
    %p193 = scmp.lt.s32.totalorder %s11, 5
    %p194 = pnand %p192, %p193
    %p195 = pneg %p194
    // Predicated region
    $region25: #{expert_forward.2} parent=5 // pred_check
      _
    $region26: #{expert_forward.2} parent=5 // pred_check_branch
      %197 = sbr.rel (%p194) target = $region28
    $region27: #{expert_forward.2} parent=5 // pred_region
      %s198 = ssub.s32 %s11, 1
      %s199 = smul.u32 %s20, 2
      %s200 = sadd.s32 %s199, %s21
      %s201 = smul.u32 2, %s200
      %p202 = scmp.lt.s32.totalorder %s201, 7
      %s203 = scalar_select %p202, %s201, 7
      %s204 = smul.addr %s203, 6
      %s205 = smul.addr %s204, 8
      %s206 = scalar_lea.vmem %s0, %s205
      %p207 = pneg %p53
      %p208 = pneg %p50
      %p209 = pneg %p74
      %p210 = pneg %p71
      %p211 = pneg %p104
      %p212 = pneg %p101
      %s213 = smul.u32 %s20, 2
      %s214 = sadd.s32 %s213, %s21
      %s215 = smul.u32 2, %s214
      %p216 = scmp.lt.s32.totalorder %s215, 7
      %s217 = scalar_select %p216, %s215, 7
      %s218 = smul.addr %s217, 4
      %s219 = scalar_lea.vmem %s2, %s218
      %p220 = pneg %p130
      %p221 = pneg %p127
      %p222 = scmp.lt.s32.totalorder %s20, 1
      %s223 = scalar_select %p222, %s20, 1
      %s224 = scalar_lea.vmem %s3, %s223
      %p225 = pneg %p156
      %p226 = pneg %p153
      %p227 = scmp.lt.s32.totalorder %s20, 1
      %s228 = scalar_select %p227, %s20, 1
      %s229 = scalar_lea.vmem %s4, %s228
      %s230 = smul.u32 %s20, 2
      %s231 = sadd.s32 %s230, %s21
      %s232 = smul.u32 2, %s231
      %p233 = scmp.lt.s32.totalorder %s232, 7
      %s234 = scalar_select %p233, %s232, 7
      %s235 = smul.addr %s234, 6
      %s236 = smul.addr %s235, 8
      %s237 = scalar_lea.vmem %s0, %s236
      %s238 = smul.u32 %s20, 2
      %s239 = sadd.s32 %s238, %s21
      %s240 = smul.u32 2, %s239
      %s241 = smul.u32 %s20, 2
      %s242 = sadd.s32 %s241, %s21
      %s243 = smul.u32 2, %s242
      %p244 = scmp.lt.s32.totalorder %s243, 7
      %s245 = scalar_select %p244, %s243, 7
      %s246 = smul.addr %s245, 4
      %s247 = scalar_lea.vmem %s2, %s246
      %s248 = smul.u32 %s20, 2
      %s249 = sadd.s32 %s248, %s21
      %s250 = smul.u32 2, %s249
      %p251 = scmp.lt.s32.totalorder %s20, 1
      %s252 = scalar_select %p251, %s20, 1
      %s253 = scalar_lea.vmem %s3, %s252
      %p254 = scmp.lt.s32.totalorder %s20, 1
      %s255 = scalar_select %p254, %s20, 1
      %s256 = scalar_lea.vmem %s4, %s255
      %p258 = scmp.eq.s32.totalorder %s21, 0
      // Predicated region
      $region29: #{expert_forward.2} parent=27 // pred_check
        %p259 = pneg %p258
      $region30: #{expert_forward.2} parent=27 // pred_check_branch
        %261 = sbr.rel (%p259) target = $region32
      $region31: #{expert_forward.2} parent=27 // pred_region
        %262 = vst [vmem:[%s253] sm:$0x1] 0.0
        %263 = vst [vmem:[%s256] sm:$0x1] 0.0
      $region32: #{expert_forward.2} parent=27 // pred_fallthru
        _
      %v264 = vld [vmem:[%s237] sm:$0xff]
      %v265 = vld [vmem:[%s237 + $0x8] sm:$0xff]
      %v266 = vld [vmem:[%s237 + $0x10] sm:$0xff]
      %v267 = vld [vmem:[%s237 + $0x18] sm:$0xff]
      %v268 = vld [vmem:[%s237 + $0x20] sm:$0xff]
      %v269 = vld [vmem:[%s237 + $0x28] sm:$0xff]
      %v270 = vld [vmem:[%s237 + $0x30] sm:$0xff]
      %v271 = vld [vmem:[%s237 + $0x38] sm:$0xff]
      %v272 = vld [vmem:[%s237 + $0x40] sm:$0xff]
      %v273 = vld [vmem:[%s237 + $0x48] sm:$0xff]
      %v274 = vld [vmem:[%s237 + $0x50] sm:$0xff]
      %v275 = vld [vmem:[%s237 + $0x58] sm:$0xff]
      %v276 = vpack.c.bf16 %v270, %v264
      %v277 = vpack.c.bf16 %v271, %v265
      %v278 = vpack.c.bf16 %v272, %v266
      %v279 = vpack.c.bf16 %v273, %v267
      %v280 = vpack.c.bf16 %v274, %v268
      %v281 = vpack.c.bf16 %v275, %v269
      %v282 = vld [vmem:[%s1] sm:$0xf]
      %v283 = vld [vmem:[%s1 + $0x4] sm:$0xf]
      %v284 = vld [vmem:[%s1 + $0x8] sm:$0xf]
      %v285 = vld [vmem:[%s1 + $0xc] sm:$0xf]
      %v286 = vld [vmem:[%s1 + $0x10] sm:$0xf]
      %v287 = vld [vmem:[%s1 + $0x14] sm:$0xf]
      %v288 = vld [vmem:[%s1 + $0x18] sm:$0xf]
      %v289 = vld [vmem:[%s1 + $0x1c] sm:$0xf]
      %v290 = vld [vmem:[%s1 + $0x20] sm:$0xf]
      %v291 = vld [vmem:[%s1 + $0x24] sm:$0xf]
      %v292 = vld [vmem:[%s1 + $0x28] sm:$0xf]
      %v293 = vld [vmem:[%s1 + $0x2c] sm:$0xf]
      %v294 = vld [vmem:[%s1 + $0x30] sm:$0xf]
      %v295 = vld [vmem:[%s1 + $0x34] sm:$0xf]
      %v296 = vld [vmem:[%s1 + $0x38] sm:$0xf]
      %v297 = vld [vmem:[%s1 + $0x3c] sm:$0xf]
      %v298 = vld [vmem:[%s1 + $0x40] sm:$0xf]
      %v299 = vld [vmem:[%s1 + $0x44] sm:$0xf]
      %v300 = vld [vmem:[%s1 + $0x48] sm:$0xf]
      %v301 = vld [vmem:[%s1 + $0x4c] sm:$0xf]
      %v302 = vld [vmem:[%s1 + $0x50] sm:$0xf]
      %v303 = vld [vmem:[%s1 + $0x54] sm:$0xf]
      %v304 = vld [vmem:[%s1 + $0x58] sm:$0xf]
      %v305 = vld [vmem:[%s1 + $0x5c] sm:$0xf]
      %v306 = vld [vmem:[%s1 + $0x60] sm:$0xf]
      %v307 = vld [vmem:[%s1 + $0x64] sm:$0xf]
      %v308 = vld [vmem:[%s1 + $0x68] sm:$0xf]
      %v309 = vld [vmem:[%s1 + $0x6c] sm:$0xf]
      %v310 = vld [vmem:[%s1 + $0x70] sm:$0xf]
      %v311 = vld [vmem:[%s1 + $0x74] sm:$0xf]
      %v312 = vld [vmem:[%s1 + $0x78] sm:$0xf]
      %v313 = vld [vmem:[%s1 + $0x7c] sm:$0xf]
      %v314 = vld [vmem:[%s1 + $0x80] sm:$0xf]
      %v315 = vld [vmem:[%s1 + $0x84] sm:$0xf]
      %v316 = vld [vmem:[%s1 + $0x88] sm:$0xf]
      %v317 = vld [vmem:[%s1 + $0x8c] sm:$0xf]
      %v318 = vld [vmem:[%s1 + $0x90] sm:$0xf]
      %v319 = vld [vmem:[%s1 + $0x94] sm:$0xf]
      %v320 = vld [vmem:[%s1 + $0x98] sm:$0xf]
      %v321 = vld [vmem:[%s1 + $0x9c] sm:$0xf]
      %v322 = vld [vmem:[%s1 + $0xa0] sm:$0xf]
      %v323 = vld [vmem:[%s1 + $0xa4] sm:$0xf]
      %v324 = vld [vmem:[%s1 + $0xa8] sm:$0xf]
      %v325 = vld [vmem:[%s1 + $0xac] sm:$0xf]
      %v326 = vld [vmem:[%s1 + $0xb0] sm:$0xf]
      %v327 = vld [vmem:[%s1 + $0xb4] sm:$0xf]
      %v328 = vld [vmem:[%s1 + $0xb8] sm:$0xf]
      %v329 = vld [vmem:[%s1 + $0xbc] sm:$0xf]
      %v330 = vld [vmem:[%s1 + $0xc0] sm:$0xf]
      %v331 = vld [vmem:[%s1 + $0xc4] sm:$0xf]
      %v332 = vld [vmem:[%s1 + $0xc8] sm:$0xf]
      %v333 = vld [vmem:[%s1 + $0xcc] sm:$0xf]
      %v334 = vld [vmem:[%s1 + $0xd0] sm:$0xf]
      %v335 = vld [vmem:[%s1 + $0xd4] sm:$0xf]
      %v336 = vld [vmem:[%s1 + $0xd8] sm:$0xf]
      %v337 = vld [vmem:[%s1 + $0xdc] sm:$0xf]
      %v338 = vld [vmem:[%s1 + $0xe0] sm:$0xf]
      %v339 = vld [vmem:[%s1 + $0xe4] sm:$0xf]
      %v340 = vld [vmem:[%s1 + $0xe8] sm:$0xf]
      %v341 = vld [vmem:[%s1 + $0xec] sm:$0xf]
      %v342 = vld [vmem:[%s1 + $0xf0] sm:$0xf]
      %v343 = vld [vmem:[%s1 + $0xf4] sm:$0xf]
      %v344 = vld [vmem:[%s1 + $0xf8] sm:$0xf]
      %v345 = vld [vmem:[%s1 + $0xfc] sm:$0xf]
      %v346 = vld [vmem:[%s1 + $0x100] sm:$0xf]
      %v347 = vld [vmem:[%s1 + $0x104] sm:$0xf]
      %v348 = vld [vmem:[%s1 + $0x108] sm:$0xf]
      %v349 = vld [vmem:[%s1 + $0x10c] sm:$0xf]
      %v350 = vld [vmem:[%s1 + $0x110] sm:$0xf]
      %v351 = vld [vmem:[%s1 + $0x114] sm:$0xf]
      %v352 = vld [vmem:[%s1 + $0x118] sm:$0xf]
      %v353 = vld [vmem:[%s1 + $0x11c] sm:$0xf]
      %v354 = vld [vmem:[%s1 + $0x120] sm:$0xf]
      %v355 = vld [vmem:[%s1 + $0x124] sm:$0xf]
      %v356 = vld [vmem:[%s1 + $0x128] sm:$0xf]
      %v357 = vld [vmem:[%s1 + $0x12c] sm:$0xf]
      %v358 = vld [vmem:[%s1 + $0x130] sm:$0xf]
      %v359 = vld [vmem:[%s1 + $0x134] sm:$0xf]
      %v360 = vld [vmem:[%s1 + $0x138] sm:$0xf]
      %v361 = vld [vmem:[%s1 + $0x13c] sm:$0xf]
      %v362 = vld [vmem:[%s1 + $0x140] sm:$0xf]
      %v363 = vld [vmem:[%s1 + $0x144] sm:$0xf]
      %v364 = vld [vmem:[%s1 + $0x148] sm:$0xf]
      %v365 = vld [vmem:[%s1 + $0x14c] sm:$0xf]
      %v366 = vld [vmem:[%s1 + $0x150] sm:$0xf]
      %v367 = vld [vmem:[%s1 + $0x154] sm:$0xf]
      %v368 = vld [vmem:[%s1 + $0x158] sm:$0xf]
      %v369 = vld [vmem:[%s1 + $0x15c] sm:$0xf]
      %v370 = vld [vmem:[%s1 + $0x160] sm:$0xf]
      %v371 = vld [vmem:[%s1 + $0x164] sm:$0xf]
      %v372 = vld [vmem:[%s1 + $0x168] sm:$0xf]
      %v373 = vld [vmem:[%s1 + $0x16c] sm:$0xf]
      %v374 = vld [vmem:[%s1 + $0x170] sm:$0xf]
      %v375 = vld [vmem:[%s1 + $0x174] sm:$0xf]
      %v376 = vld [vmem:[%s1 + $0x178] sm:$0xf]
      %v377 = vld [vmem:[%s1 + $0x17c] sm:$0xf]
      %v474 = vunpack.c.l.b16 %v282
      %v475 = vunpack.c.l.b16 %v283
      %v476 = vunpack.c.l.b16 %v284
      %v477 = vunpack.c.l.b16 %v285
      %v478 = vunpack.c.l.b16 %v286
      %v479 = vunpack.c.l.b16 %v287
      %v480 = vunpack.c.l.b16 %v288
      %v481 = vunpack.c.l.b16 %v289
      %v482 = vunpack.c.l.b16 %v290
      %v483 = vunpack.c.l.b16 %v291
      %v484 = vunpack.c.l.b16 %v292
      %v485 = vunpack.c.l.b16 %v293
      %v486 = vunpack.c.l.b16 %v294
      %v487 = vunpack.c.l.b16 %v295
      %v488 = vunpack.c.l.b16 %v296
      %v489 = vunpack.c.l.b16 %v297
      %v490 = vunpack.c.l.b16 %v298
      %v491 = vunpack.c.l.b16 %v299
      %v492 = vunpack.c.l.b16 %v300
      %v493 = vunpack.c.l.b16 %v301
      %v494 = vunpack.c.l.b16 %v302
      %v495 = vunpack.c.l.b16 %v303
      %v496 = vunpack.c.l.b16 %v304
      %v497 = vunpack.c.l.b16 %v305
      %v498 = vunpack.c.l.b16 %v306
      %v499 = vunpack.c.l.b16 %v307
      %v500 = vunpack.c.l.b16 %v308
      %v501 = vunpack.c.l.b16 %v309
      %v502 = vunpack.c.l.b16 %v310
      %v503 = vunpack.c.l.b16 %v311
      %v504 = vunpack.c.l.b16 %v312
      %v505 = vunpack.c.l.b16 %v313
      %v506 = vunpack.c.l.b16 %v314
      %v507 = vunpack.c.l.b16 %v315
      %v508 = vunpack.c.l.b16 %v316
      %v509 = vunpack.c.l.b16 %v317
      %v510 = vunpack.c.l.b16 %v318
      %v511 = vunpack.c.l.b16 %v319
      %v512 = vunpack.c.l.b16 %v320
      %v513 = vunpack.c.l.b16 %v321
      %v514 = vunpack.c.l.b16 %v322
      %v515 = vunpack.c.l.b16 %v323
      %v516 = vunpack.c.l.b16 %v324
      %v517 = vunpack.c.l.b16 %v325
      %v518 = vunpack.c.l.b16 %v326
      %v519 = vunpack.c.l.b16 %v327
      %v520 = vunpack.c.l.b16 %v328
      %v521 = vunpack.c.l.b16 %v329
      %v522 = vunpack.c.l.b16 %v330
      %v523 = vunpack.c.l.b16 %v331
      %v524 = vunpack.c.l.b16 %v332
      %v525 = vunpack.c.l.b16 %v333
      %v526 = vunpack.c.l.b16 %v334
      %v527 = vunpack.c.l.b16 %v335
      %v528 = vunpack.c.l.b16 %v336
      %v529 = vunpack.c.l.b16 %v337
      %v530 = vunpack.c.l.b16 %v338
      %v531 = vunpack.c.l.b16 %v339
      %v532 = vunpack.c.l.b16 %v340
      %v533 = vunpack.c.l.b16 %v341
      %v534 = vunpack.c.l.b16 %v342
      %v535 = vunpack.c.l.b16 %v343
      %v536 = vunpack.c.l.b16 %v344
      %v537 = vunpack.c.l.b16 %v345
      %v538 = vunpack.c.l.b16 %v346
      %v539 = vunpack.c.l.b16 %v347
      %v540 = vunpack.c.l.b16 %v348
      %v541 = vunpack.c.l.b16 %v349
      %v542 = vunpack.c.l.b16 %v350
      %v543 = vunpack.c.l.b16 %v351
      %v544 = vunpack.c.l.b16 %v352
      %v545 = vunpack.c.l.b16 %v353
      %v546 = vunpack.c.l.b16 %v354
      %v547 = vunpack.c.l.b16 %v355
      %v548 = vunpack.c.l.b16 %v356
      %v549 = vunpack.c.l.b16 %v357
      %v550 = vunpack.c.l.b16 %v358
      %v551 = vunpack.c.l.b16 %v359
      %v552 = vunpack.c.l.b16 %v360
      %v553 = vunpack.c.l.b16 %v361
      %v554 = vunpack.c.l.b16 %v362
      %v555 = vunpack.c.l.b16 %v363
      %v556 = vunpack.c.l.b16 %v364
      %v557 = vunpack.c.l.b16 %v365
      %v558 = vunpack.c.l.b16 %v366
      %v559 = vunpack.c.l.b16 %v367
      %v560 = vunpack.c.l.b16 %v368
      %v561 = vunpack.c.l.b16 %v369
      %v562 = vunpack.c.l.b16 %v370
      %v563 = vunpack.c.l.b16 %v371
      %v564 = vunpack.c.l.b16 %v372
      %v565 = vunpack.c.l.b16 %v373
      %v566 = vunpack.c.l.b16 %v374
      %v567 = vunpack.c.l.b16 %v375
      %v568 = vunpack.c.l.b16 %v376
      %v569 = vunpack.c.l.b16 %v377
      %v570 = vpack.c.b16 %v475, %v474
      %v571 = vpack.c.b16 %v477, %v476
      %v572 = vpack.c.b16 %v479, %v478
      %v573 = vpack.c.b16 %v481, %v480
      %v574 = vpack.c.b16 %v483, %v482
      %v575 = vpack.c.b16 %v485, %v484
      %v576 = vpack.c.b16 %v487, %v486
      %v577 = vpack.c.b16 %v489, %v488
      %v578 = vpack.c.b16 %v491, %v490
      %v579 = vpack.c.b16 %v493, %v492
      %v580 = vpack.c.b16 %v495, %v494
      %v581 = vpack.c.b16 %v497, %v496
      %v582 = vpack.c.b16 %v499, %v498
      %v583 = vpack.c.b16 %v501, %v500
      %v584 = vpack.c.b16 %v503, %v502
      %v585 = vpack.c.b16 %v505, %v504
      %v586 = vpack.c.b16 %v507, %v506
      %v587 = vpack.c.b16 %v509, %v508
      %v588 = vpack.c.b16 %v511, %v510
      %v589 = vpack.c.b16 %v513, %v512
      %v590 = vpack.c.b16 %v515, %v514
      %v591 = vpack.c.b16 %v517, %v516
      %v592 = vpack.c.b16 %v519, %v518
      %v593 = vpack.c.b16 %v521, %v520
      %v594 = vpack.c.b16 %v523, %v522
      %v595 = vpack.c.b16 %v525, %v524
      %v596 = vpack.c.b16 %v527, %v526
      %v597 = vpack.c.b16 %v529, %v528
      %v598 = vpack.c.b16 %v531, %v530
      %v599 = vpack.c.b16 %v533, %v532
      %v600 = vpack.c.b16 %v535, %v534
      %v601 = vpack.c.b16 %v537, %v536
      %v602 = vpack.c.b16 %v539, %v538
      %v603 = vpack.c.b16 %v541, %v540
      %v604 = vpack.c.b16 %v543, %v542
      %v605 = vpack.c.b16 %v545, %v544
      %v606 = vpack.c.b16 %v547, %v546
      %v607 = vpack.c.b16 %v549, %v548
      %v608 = vpack.c.b16 %v551, %v550
      %v609 = vpack.c.b16 %v553, %v552
      %v610 = vpack.c.b16 %v555, %v554
      %v611 = vpack.c.b16 %v557, %v556
      %v612 = vpack.c.b16 %v559, %v558
      %v613 = vpack.c.b16 %v561, %v560
      %v614 = vpack.c.b16 %v563, %v562
      %v615 = vpack.c.b16 %v565, %v564
      %v616 = vpack.c.b16 %v567, %v566
      %v617 = vpack.c.b16 %v569, %v568
      %666 = vmatprep.subr.bf16.mxu0 0
      %667 = vmatpush1.bf16.msra.mxu0 %v570
      %668 = vmatprep.subr.bf16.mxu0 0
      %669 = vmatpush1.bf16.msra.mxu0 %v571
      %670 = vmatprep.subr.bf16.mxu0 0
      %671 = vmatpush1.bf16.msra.mxu0 %v572
      %672 = vmatprep.subr.bf16.mxu0 0
      %673 = vmatpush1.bf16.msra.mxu0 %v573
      %674 = vmatprep.subr.bf16.mxu0 0
      %675 = vmatpush1.bf16.msra.mxu0 %v574
      %676 = vmatprep.subr.bf16.mxu0 0
      %677 = vmatpush1.bf16.msra.mxu0 %v575
      %678 = vmatprep.subr.bf16.mxu0 0
      %679 = vmatpush1.bf16.msra.mxu0 %v576
      %680 = vmatprep.subr.bf16.mxu0 0
      %681 = vmatpush1.bf16.msra.mxu0 %v577
      %682 = vmatprep.subr.bf16.mxu0 0
      %683 = vmatpush1.bf16.msra.mxu0 %v578
      %684 = vmatprep.subr.bf16.mxu0 0
      %685 = vmatpush1.bf16.msra.mxu0 %v579
      %686 = vmatprep.subr.bf16.mxu0 0
      %687 = vmatpush1.bf16.msra.mxu0 %v580
      %688 = vmatprep.subr.bf16.mxu0 0
      %689 = vmatpush1.bf16.msra.mxu0 %v581
      %690 = vmatprep.subr.bf16.mxu0 0
      %691 = vmatpush1.bf16.msra.mxu0 %v582
      %692 = vmatprep.subr.bf16.mxu0 0
      %693 = vmatpush1.bf16.msra.mxu0 %v583
      %694 = vmatprep.subr.bf16.mxu0 0
      %695 = vmatpush1.bf16.msra.mxu0 %v584
      %696 = vmatprep.subr.bf16.mxu0 0
      %697 = vmatpush1.bf16.msra.mxu0 %v585
      %698 = vmatprep.mubr.bf16.mxu0 %v277
      %699 = vmatmul.mubr.bf16.gmra.mrb[0].mxu0 %v276
      %v700 = vpop.f32.mrb[0].mxu0
      %v701 = vadd.f32 0.0, %v700
      %v702 = vpop.f32.mrb[0].mxu0
      %v703 = vpop.f32.mrb[0].mxu0
      %v704 = vadd.f32 0.0, %v703
      %v705 = vpop.f32.mrb[0].mxu0
      %706 = vdwg.mxu0
      %707 = vmatprep.subr.bf16.mxu0 0
      %708 = vmatpush1.bf16.msra.mxu0 %v586
      %709 = vmatprep.subr.bf16.mxu0 0
      %710 = vmatpush1.bf16.msra.mxu0 %v587
      %711 = vmatprep.subr.bf16.mxu0 0
      %712 = vmatpush1.bf16.msra.mxu0 %v588
      %713 = vmatprep.subr.bf16.mxu0 0
      %714 = vmatpush1.bf16.msra.mxu0 %v589
      %715 = vmatprep.subr.bf16.mxu0 0
      %716 = vmatpush1.bf16.msra.mxu0 %v590
      %717 = vmatprep.subr.bf16.mxu0 0
      %718 = vmatpush1.bf16.msra.mxu0 %v591
      %719 = vmatprep.subr.bf16.mxu0 0
      %720 = vmatpush1.bf16.msra.mxu0 %v592
      %721 = vmatprep.subr.bf16.mxu0 0
      %722 = vmatpush1.bf16.msra.mxu0 %v593
      %723 = vmatprep.subr.bf16.mxu0 0
      %724 = vmatpush1.bf16.msra.mxu0 %v594
      %725 = vmatprep.subr.bf16.mxu0 0
      %726 = vmatpush1.bf16.msra.mxu0 %v595
      %727 = vmatprep.subr.bf16.mxu0 0
      %728 = vmatpush1.bf16.msra.mxu0 %v596
      %729 = vmatprep.subr.bf16.mxu0 0
      %730 = vmatpush1.bf16.msra.mxu0 %v597
      %731 = vmatprep.subr.bf16.mxu0 0
      %732 = vmatpush1.bf16.msra.mxu0 %v598
      %733 = vmatprep.subr.bf16.mxu0 0
      %734 = vmatpush1.bf16.msra.mxu0 %v599
      %735 = vmatprep.subr.bf16.mxu0 0
      %736 = vmatpush1.bf16.msra.mxu0 %v600
      %737 = vmatprep.subr.bf16.mxu0 0
      %738 = vmatpush1.bf16.msra.mxu0 %v601
      %739 = vmatprep.mubr.bf16.mxu0 %v279
      %740 = vmatmul.mubr.bf16.gmra.mrb[0].mxu0 %v278
      %v741 = vpop.f32.mrb[0].mxu0
      %v742 = vadd.f32 %v701, %v741
      %v743 = vpop.f32.mrb[0].mxu0
      %v744 = vpop.f32.mrb[0].mxu0
      %v745 = vadd.f32 %v704, %v744
      %v746 = vpop.f32.mrb[0].mxu0
      %747 = vdwg.mxu0
      %748 = vmatprep.subr.bf16.mxu0 0
      %749 = vmatpush1.bf16.msra.mxu0 %v602
      %750 = vmatprep.subr.bf16.mxu0 0
      %751 = vmatpush1.bf16.msra.mxu0 %v603
      %752 = vmatprep.subr.bf16.mxu0 0
      %753 = vmatpush1.bf16.msra.mxu0 %v604
      %754 = vmatprep.subr.bf16.mxu0 0
      %755 = vmatpush1.bf16.msra.mxu0 %v605
      %756 = vmatprep.subr.bf16.mxu0 0
      %757 = vmatpush1.bf16.msra.mxu0 %v606
      %758 = vmatprep.subr.bf16.mxu0 0
      %759 = vmatpush1.bf16.msra.mxu0 %v607
      %760 = vmatprep.subr.bf16.mxu0 0
      %761 = vmatpush1.bf16.msra.mxu0 %v608
      %762 = vmatprep.subr.bf16.mxu0 0
      %763 = vmatpush1.bf16.msra.mxu0 %v609
      %764 = vmatprep.subr.bf16.mxu0 0
      %765 = vmatpush1.bf16.msra.mxu0 %v610
      %766 = vmatprep.subr.bf16.mxu0 0
      %767 = vmatpush1.bf16.msra.mxu0 %v611
      %768 = vmatprep.subr.bf16.mxu0 0
      %769 = vmatpush1.bf16.msra.mxu0 %v612
      %770 = vmatprep.subr.bf16.mxu0 0
      %771 = vmatpush1.bf16.msra.mxu0 %v613
      %772 = vmatprep.subr.bf16.mxu0 0
      %773 = vmatpush1.bf16.msra.mxu0 %v614
      %774 = vmatprep.subr.bf16.mxu0 0
      %775 = vmatpush1.bf16.msra.mxu0 %v615
      %776 = vmatprep.subr.bf16.mxu0 0
      %777 = vmatpush1.bf16.msra.mxu0 %v616
      %778 = vmatprep.subr.bf16.mxu0 0
      %779 = vmatpush1.bf16.msra.mxu0 %v617
      %780 = vmatprep.mubr.bf16.mxu0 %v281
      %781 = vmatmul.mubr.bf16.gmra.mrb[0].mxu0 %v280
      %v782 = vpop.f32.mrb[0].mxu0
      %v783 = vadd.f32 %v742, %v782
      %v784 = vpop.f32.mrb[0].mxu0
      %v785 = vpop.f32.mrb[0].mxu0
      %v786 = vadd.f32 %v745, %v785
      %v787 = vpop.f32.mrb[0].mxu0
      %788 = vdwg.mxu0
      %v789 = vpack.c.bf16 %v786, %v783
      %v791 = vunpack.c.l.b16 %v789
      %v792 = vunpack.c.h.b16 %v789
      %v793 = vpack.c.b16 %v791, %v791
      %v794 = vpack.c.b16 %v792, %v792
      %797 = vst [vmem:[%s247] sm:$0xf] %v793
      %798 = vst [vmem:[%s247 + $0x4] sm:$0xf] %v794
      %v799 = vld [vmem:[%s253] sm:$0x1]
      %v800 = vadd.f32 %v783, %v786
      %v801 = vrot.slane %v800, 4
      %v802 = vadd.f32 %v800, %v801
      %v803 = vrot.slane %v802, 2
      %v804 = vadd.f32 %v802, %v803
      %v805 = vrot.slane %v804, 1
      %v806 = vadd.f32 %v804, %v805
      %v807 = vadd.f32 %v799, %v806
      %808 = vst [vmem:[%s253] sm:$0x1] %v807
      %v809 = vld [vmem:[%s256] sm:$0x1]
      %v810 = vmul.f32 %v783, %v783
      %v811 = vmul.f32 %v786, %v786
      %v812 = vadd.f32 %v810, %v811
      %v813 = vrot.slane %v812, 4
      %v814 = vadd.f32 %v812, %v813
      %v815 = vrot.slane %v814, 2
      %v816 = vadd.f32 %v814, %v815
      %v817 = vrot.slane %v816, 1
      %v818 = vadd.f32 %v816, %v817
      %v819 = vadd.f32 %v809, %v818
      %820 = vst [vmem:[%s256] sm:$0x1] %v819
      %s821 = smul.u32 %s20, 2
      %s822 = sadd.s32 %s821, %s21
      %s823 = smul.u32 2, %s822
      %p824 = scmp.lt.s32.totalorder %s823, 7
      %s825 = scalar_select %p824, %s823, 7
      %s826 = smul.addr %s825, 4
      %s827 = scalar_lea.vmem %s2, %s826
      %p828 = scmp.lt.s32.totalorder %s20, 1
      %s829 = scalar_select %p828, %s20, 1
      %s830 = scalar_lea.vmem %s3, %s829
      %p831 = scmp.lt.s32.totalorder %s20, 1
      %s832 = scalar_select %p831, %s20, 1
      %s833 = scalar_lea.vmem %s4, %s832
      // Predicated region
      $region33: #{expert_forward.2} parent=27 // pred_check
        %p834 = pneg %p101
      $region34: #{expert_forward.2} parent=27 // pred_check_branch
        %836 = sbr.rel (%p834) target = $region36
      $region35: #{expert_forward.2} parent=27 // pred_region
        %s837 = smul.u32 %s20, 2
        %s838 = sadd.s32 %s837, %s21
        %s839 = smul.u32 2, %s838
      $region36: #{expert_forward.2} parent=27 // pred_fallthru
        _
      // Predicated region
      $region37: #{expert_forward.2} parent=27 // pred_check
        %p840 = pneg %p127
      $region38: #{expert_forward.2} parent=27 // pred_check_branch
        %842 = sbr.rel (%p840) target = $region40
      $region39: #{expert_forward.2} parent=27 // pred_region
        _
      $region40: #{expert_forward.2} parent=27 // pred_fallthru
        _
      // Predicated region
      $region41: #{expert_forward.2} parent=27 // pred_check
        %p843 = pneg %p153
      $region42: #{expert_forward.2} parent=27 // pred_check_branch
        %845 = sbr.rel (%p843) target = $region44
      $region43: #{expert_forward.2} parent=27 // pred_region
        _
      $region44: #{expert_forward.2} parent=27 // pred_fallthru
        _
    $region28: #{expert_forward.2} parent=5 // pred_fallthru
      _
    %p846 = scmp.le.s32.totalorder 2, %s11
    // Predicated region
    $region45: #{expert_forward.2} parent=5 // pred_check
      %p847 = pneg %p846
    $region46: #{expert_forward.2} parent=5 // pred_check_branch
      %849 = sbr.rel (%p847) target = $region48
    $region47: #{expert_forward.2} parent=5 // pred_region
      %s850 = ssub.s32 %s11, 2
      // Predicated region
      $region49: #{expert_forward.2} parent=47 // pred_check
        %p851 = pneg %p107
      $region50: #{expert_forward.2} parent=47 // pred_check_branch
        %853 = sbr.rel (%p851) target = $region52
      $region51: #{expert_forward.2} parent=47 // pred_region
        %s854 = smul.u32 %s22, 2
        %s855 = sadd.s32 %s854, %s23
        %s856 = smul.u32 2, %s855
        %p857 = scmp.lt.s32.totalorder %s856, 7
        %s858 = scalar_select %p857, %s856, 7
        %s859 = smul.addr %s858, 4
        %s860 = scalar_lea.vmem %s2, %s859
      $region52: #{expert_forward.2} parent=47 // pred_fallthru
        _
      // Predicated region
      $region53: #{expert_forward.2} parent=47 // pred_check
        %p861 = pneg %p133
      $region54: #{expert_forward.2} parent=47 // pred_check_branch
        %863 = sbr.rel (%p861) target = $region56
      $region55: #{expert_forward.2} parent=47 // pred_region
        %p864 = scmp.lt.s32.totalorder %s22, 1
        %s865 = scalar_select %p864, %s22, 1
        %s866 = scalar_lea.vmem %s3, %s865
      $region56: #{expert_forward.2} parent=47 // pred_fallthru
        _
      // Predicated region
      $region57: #{expert_forward.2} parent=47 // pred_check
        %p867 = pneg %p159
      $region58: #{expert_forward.2} parent=47 // pred_check_branch
        %869 = sbr.rel (%p867) target = $region60
      $region59: #{expert_forward.2} parent=47 // pred_region
        %p870 = scmp.lt.s32.totalorder %s22, 1
        %s871 = scalar_select %p870, %s22, 1
        %s872 = scalar_lea.vmem %s4, %s871
      $region60: #{expert_forward.2} parent=47 // pred_fallthru
        _
    $region48: #{expert_forward.2} parent=5 // pred_fallthru
      _
  $region6: #{expert_forward.2} parent=0 // loop_footer
    %s15 = sadd.s32 1, %s11
  $region7: #{expert_forward.2} parent=0 // loop_footer_branch
    %10 = sbr.rel target = $region3
  $region8: #{expert_forward.2} parent=0 // loop_exit
    _

</llo_original>
